<compile_context>
chip_gen: v7x
topology: tpu7x:2x2x1
jax: 0.10.0
libtpu: 0.0.40
codegen_flags: <defaults>
</compile_context>

<pallas_src>
import functools
import math

import jax
import jax.numpy as jnp
from jax.experimental import pallas as pl
from jax.experimental.pallas import tpu as pltpu


# ---------------------------------------------------------------------------
# helpers
# ---------------------------------------------------------------------------
def _layernorm(v, gamma, beta, eps=1e-5):
    mu = jnp.mean(v, axis=-1, keepdims=True)
    var = jnp.mean(jnp.square(v - mu), axis=-1, keepdims=True)
    return (v - mu) * jax.lax.rsqrt(var + eps) * gamma + beta


def _vmem_limit_bytes():
    """Generation-aware scoped-VMEM request (v7x: 64 MiB physical; v5e/v6e: 128 MiB)."""
    try:
        cap = pltpu.get_tpu_info().vmem_capacity_bytes
    except Exception:
        cap = 64 * 1024 * 1024  # unknown -> assume small-VMEM part (safe everywhere)
    if cap <= 64 * 1024 * 1024:
        return 48 * 1024 * 1024   # leave headroom for Mosaic internal scratch on v7x
    return 100 * 1024 * 1024      # v5e / v6e


# ---------------------------------------------------------------------------
# Kernel 1: LayerNorm1 + fused QKV projection (once per token)
# ---------------------------------------------------------------------------
def _qkv_proj_kernel(x_ref, g1_ref, b1_ref, wqkv_ref, qkv_ref):
    x = x_ref[0].astype(jnp.float32)                                  # (TS, D)
    xn = _layernorm(x, g1_ref[0], b1_ref[0]).astype(jnp.bfloat16)
    qkv_ref[0] = jnp.dot(xn, wqkv_ref[...],
                         preferred_element_type=jnp.float32).astype(qkv_ref.dtype)


# ---------------------------------------------------------------------------
# Kernel 2: flash attention over precomputed K/V tiles + chunked FFN + residual
# ---------------------------------------------------------------------------
def _attn_ffn_kernel(
    x_ref,             # (1, TQ, D)  original x (residual + FFN input)
    q_ref,             # (1, TQ, D)  bf16, pre-scaled Q (from kernel 1)
    k_ref,             # (1, TK, D)  bf16 K tile
    v_ref,             # (1, TK, D)  bf16 V tile
    g2_ref, b2_ref,    # (1, D)      layernorm-2 gamma / beta
    wo_ref,            # (D, D)   bf16
    w1t_ref,           # (F, D)   bf16  linear1 weight, transposed ([out, in])
    bb1_ref,           # (n_fc, FC) f32 linear1 bias, one row per d_ff chunk
    w2_ref,            # (F, D)   bf16  linear2 weight ([in, out])
    bb2_ref,           # (1, D)   f32
    ls_ref,            # (1, D)   f32   layer_scale
    o_ref,             # (1, TQ, D)
    qh_sc,             # (H, TQ, dk) f32 scratch
    m_sc, l_sc,        # (H, TQ, 1)  f32 scratch
    acc_sc,            # (H, TQ, dk) f32 scratch
    res_sc,            # (TQ, D)     f32 scratch  (x + feed-forward branch)
    *, num_heads: int, ff_chunk: int,
):
    f32, bf16 = jnp.float32, jnp.bfloat16
    ki = pl.program_id(2)
    TQ, D = x_ref.shape[1], x_ref.shape[2]
    H = num_heads
    dk = D // H
    TK = k_ref.shape[1]

    # ---- once per (batch, query tile): init, Q relayout, FFN + residual ----
    @pl.when(ki == 0)
    def _init():
        m_sc[...] = jnp.full(m_sc.shape, -jnp.inf, f32)
        l_sc[...] = jnp.zeros(l_sc.shape, f32)
        acc_sc[...] = jnp.zeros(acc_sc.shape, f32)

        # Q already LayerNorm'd, projected and 1/sqrt(dk)-scaled by kernel 1;
        # relayout to head-major once (not per kv step).
        q = q_ref[0].astype(f32)                                       # (TQ, D)
        qh_sc[...] = q.reshape(TQ, H, dk).transpose(1, 0, 2)           # (H, TQ, dk)

        xq = x_ref[0].astype(f32)                                      # (TQ, D)
        xn2 = _layernorm(xq, g2_ref[0], b2_ref[0]).astype(bf16)
        n_fc = w1t_ref.shape[0] // ff_chunk

        def ff_step(fc, acc):
            f0 = pl.multiple_of(fc * ff_chunk, ff_chunk)
            w1c = w1t_ref[pl.ds(f0, ff_chunk), :]                      # (FC, D) bf16
            b1c = bb1_ref[pl.ds(fc, 1), :]                             # (1, FC) f32
            # xn2 @ w1c^T : contraction over D on the last dim of both operands.
            h1 = jax.lax.dot_general(
                xn2, w1c, (((1,), (1,)), ((), ())),
                preferred_element_type=f32) + b1c                      # (TQ, FC)
            # nn.GELU() default = exact erf GELU.
            h1 = jax.nn.gelu(h1, approximate=False).astype(bf16)
            w2c = w2_ref[pl.ds(f0, ff_chunk), :]                       # (FC, D) bf16
            return acc + jnp.dot(h1, w2c, preferred_element_type=f32)

        ff = jax.lax.fori_loop(0, n_fc, ff_step, jnp.zeros((TQ, D), f32))
        res_sc[...] = xq + ls_ref[0] * (ff + bb2_ref[0])

    # ---- every kv step: flash-style online-softmax update ----
    kh = k_ref[0].astype(f32).reshape(TK, H, dk).transpose(1, 0, 2)    # (H, TK, dk)
    vh = v_ref[0].astype(f32).reshape(TK, H, dk).transpose(1, 0, 2)

    s = jnp.einsum("hqd,hkd->hqk", qh_sc[...].astype(bf16), kh.astype(bf16),
                   preferred_element_type=f32)                          # (H, TQ, TK)
    m_prev = m_sc[...]
    m_new = jnp.maximum(m_prev, s.max(axis=-1, keepdims=True))
    alpha = jnp.exp(m_prev - m_new)
    p = jnp.exp(s - m_new)
    l_sc[...] = alpha * l_sc[...] + p.sum(axis=-1, keepdims=True)
    acc_sc[...] = alpha * acc_sc[...] + jnp.einsum(
        "hqk,hkd->hqd", p.astype(bf16), vh.astype(bf16),
        preferred_element_type=f32)
    m_sc[...] = m_new

    # ---- once per (batch, query tile): normalize, W_o, residual sum ----
    @pl.when(ki == pl.num_programs(2) - 1)
    def _finalize():
        ctx = acc_sc[...] * pl.reciprocal(l_sc[...], approx=True)      # (H, TQ, dk)
        ctx = ctx.transpose(1, 0, 2).reshape(TQ, D).astype(bf16)       # (TQ, D)
        attn = jnp.dot(ctx, wo_ref[...], preferred_element_type=f32)
        o_ref[0] = (res_sc[...] + attn).astype(o_ref.dtype)


# ---------------------------------------------------------------------------
# Wrapper
# ---------------------------------------------------------------------------
def transformer_block(x, params, num_heads, *, q_tile=None, kv_chunk=None,
                      ff_chunk=None):
    B, S, D = x.shape
    F = params["w1"].shape[1]
    H = num_heads
    assert D % H == 0
    dk = D // H

    vmem_limit = _vmem_limit_bytes()
    small_vmem = vmem_limit <= 48 * 1024 * 1024
    if q_tile is None:
        q_tile = 256
    if kv_chunk is None:
        kv_chunk = 256 if small_vmem else 512      # smaller score tiles on v7x
    if ff_chunk is None:
        ff_chunk = 512
    TQ, TK, FC = min(q_tile, S), min(kv_chunk, S), min(ff_chunk, F)
    assert S % TQ == 0 and S % TK == 0 and F % FC == 0
    n_fc = F // FC

    bf16 = jnp.bfloat16
    # bf16 MXU weights; fold the 1/sqrt(dk) softmax scale into the Q columns.
    wqkv = params["wqkv"]
    wqkv_s = jnp.concatenate(
        [wqkv[:, :D] * (1.0 / math.sqrt(dk)), wqkv[:, D:]], axis=1).astype(bf16)
    wo = params["wo"].astype(bf16)
    w1t = params["w1"].T.astype(bf16)              # (F, D): sublane-sliceable chunks
    w2 = params["w2"].astype(bf16)                 # (F, D)
    bb1 = params["bb1"].reshape(n_fc, FC)          # one bias row per d_ff chunk

    def _run(single_buffer_weights):
        kw = dict(pipeline_mode=pl.Buffered(1)) if single_buffer_weights else {}

        def const(shape):
            # Grid-invariant operand: fetched once, optionally single-buffered.
            return pl.BlockSpec(shape, lambda *_: (0,) * len(shape), **kw)

        # --- kernel 1: LayerNorm1 + QKV projection (K/V computed once) ---
        qkv = pl.pallas_call(
            _qkv_proj_kernel,
            out_shape=jax.ShapeDtypeStruct((B, S, 3 * D), bf16),
            grid_spec=pltpu.PrefetchScalarGridSpec(
                num_scalar_prefetch=0,
                grid=(B, S // TQ),
                in_specs=[
                    pl.BlockSpec((1, TQ, D), lambda b, si: (b, si, 0)),   # x
                    const((1, D)), const((1, D)),                          # ln1
                    const((D, 3 * D)),                                     # wqkv
                ],
                out_specs=pl.BlockSpec((1, TQ, 3 * D), lambda b, si: (b, si, 0)),
            ),
            compiler_params=pltpu.CompilerParams(
                dimension_semantics=("parallel", "parallel"),
                vmem_limit_bytes=vmem_limit,
            ),
        )(x, params["g1"], params["b1"], wqkv_s)

        # --- kernel 2: flash attention over K/V tiles + chunked FFN + residual ---
        kernel = functools.partial(_attn_ffn_kernel, num_heads=H, ff_chunk=FC)
        return pl.pallas_call(
            kernel,
            out_shape=jax.ShapeDtypeStruct((B, S, D), x.dtype),
            grid_spec=pltpu.PrefetchScalarGridSpec(
                num_scalar_prefetch=0,
                grid=(B, S // TQ, S // TK),
                in_specs=[
                    pl.BlockSpec((1, TQ, D), lambda b, qi, ki: (b, qi, 0)),  # x
                    pl.BlockSpec((1, TQ, D), lambda b, qi, ki: (b, qi, 0)),  # Q
                    pl.BlockSpec((1, TK, D), lambda b, qi, ki: (b, ki, 1)),  # K
                    pl.BlockSpec((1, TK, D), lambda b, qi, ki: (b, ki, 2)),  # V
                    const((1, D)), const((1, D)),                             # ln2
                    const((D, D)),                                            # wo
                    const((F, D)), const((n_fc, FC)),                         # w1^T, b1
                    const((F, D)), const((1, D)),                             # w2, b2
                    const((1, D)),                                            # layer_scale
                ],
                out_specs=pl.BlockSpec((1, TQ, D), lambda b, qi, ki: (b, qi, 0)),
                scratch_shapes=[
                    pltpu.VMEM((H, TQ, dk), jnp.float32),   # qh
                    pltpu.VMEM((H, TQ, 1), jnp.float32),    # m
                    pltpu.VMEM((H, TQ, 1), jnp.float32),    # l
                    pltpu.VMEM((H, TQ, dk), jnp.float32),   # acc
                    pltpu.VMEM((TQ, D), jnp.float32),       # x + ff residual
                ],
            ),
            compiler_params=pltpu.CompilerParams(
                dimension_semantics=("parallel", "parallel", "arbitrary"),
                vmem_limit_bytes=vmem_limit,
            ),
        )(x, qkv, qkv, qkv,
          params["g2"], params["b2"], wo, w1t, bb1, w2, params["bb2"], params["ls"])

    try:
        return _run(True)
    except Exception:
        # pipeline_mode=pl.Buffered(1) not accepted by this Pallas build:
        # fall back to default (double-buffered) specs for invariant operands.
        return _run(False)


# ---------------------------------------------------------------------------
# Pure-JAX f32 reference (same math as the PyTorch module, mask=None, no dropout)
# ---------------------------------------------------------------------------
def reference(x, params, num_heads):
    B, S, D = x.shape
    dk = D // num_heads

    def ln(v, g, b):
        mu = jnp.mean(v, axis=-1, keepdims=True)
        var = jnp.mean((v - mu) ** 2, axis=-1, keepdims=True)
        return (v - mu) / jnp.sqrt(var + 1e-5) * g + b

    xn1 = ln(x, params["g1"][0], params["b1"][0])
    xn2 = ln(x, params["g2"][0], params["b2"][0])

    qkv = xn1 @ params["wqkv"]
    q, k, v = jnp.split(qkv, 3, axis=-1)

    def to_heads(t):
        return t.reshape(B, S, num_heads, dk).transpose(0, 2, 1, 3)

    qh, kh, vh = to_heads(q), to_heads(k), to_heads(v)
    scores = jnp.einsum("bhqd,bhkd->bhqk", qh, kh) / math.sqrt(dk)
    probs = jax.nn.softmax(scores, axis=-1)
    ctx = jnp.einsum("bhqk,bhkd->bhqd", probs, vh)
    ctx = ctx.transpose(0, 2, 1, 3).reshape(B, S, D)
    attn_out = ctx @ params["wo"]

    h1 = jax.nn.gelu(xn2 @ params["w1"] + params["bb1"][0], approximate=False)
    ff_out = params["ls"][0] * (h1 @ params["w2"] + params["bb2"][0])

    return x + attn_out + ff_out


# ---------------------------------------------------------------------------
if __name__ == "__main__":
    # Small but lane-dense shapes: d_model = 128 (one full lane width).
    B, S, D, H, F = 2, 16, 128, 4, 256   # batch, seq, d_model, heads, d_ff

    key = jax.random.PRNGKey(0)
    keys = jax.random.split(key, 8)

    x = jax.random.normal(keys[0], (B, S, D), dtype=jnp.float32)

    params = {
        # LayerNorm params (torch init: gamma=1, beta=0)
        "g1": jnp.ones((1, D), jnp.float32),
        "b1": jnp.zeros((1, D), jnp.float32),
        "g2": jnp.ones((1, D), jnp.float32),
        "b2": jnp.zeros((1, D), jnp.float32),
        # attention weights ([in, out] layout)
        "wqkv": jax.random.normal(keys[1], (D, 3 * D), jnp.float32) * (1.0 / math.sqrt(D)),
        "wo":   jax.random.normal(keys[2], (D, D), jnp.float32) * (1.0 / math.sqrt(D)),
        # feed-forward weights
        "w1":  jax.random.normal(keys[3], (D, F), jnp.float32) * (1.0 / math.sqrt(D)),
        "bb1": jax.random.normal(keys[4], (1, F), jnp.float32) * 0.01,
        "w2":  jax.random.normal(keys[5], (F, D), jnp.float32) * (1.0 / math.sqrt(F)),
        "bb2": jax.random.normal(keys[6], (1, D), jnp.float32) * 0.01,
        # layer_scale init: ones * 0.1 (torch stores (1,1,D); kernel uses (1,D))
        "ls":  jnp.full((1, D), 0.1, jnp.float32),
    }

    # Small tiles so projection tiling, the kv-axis online softmax and the FFN
    # chunk loop are all exercised: grid = (2, 2, 2), 2 kv tiles, 2 d_ff chunks.
    out = transformer_block(x, params, H, q_tile=8, kv_chunk=8, ff_chunk=128)
    out = jax.block_until_ready(out)

    ref = reference(x, params, H)
    assert out.shape == (B, S, D)
    max_err = jnp.max(jnp.abs(out - ref))
    # bf16 MXU operands / bf16 QKV storage + approx reciprocal => relaxed tolerance.
    assert jnp.allclose(out, ref, atol=5e-2, rtol=5e-2), f"max abs err = {max_err}"

    print("KERNEL_OK")
</pallas_src>

<mosaic_0001>
module attributes {stable_mosaic.version = 11 : i64} {
  func.func @_qkv_proj_kernel(%arg0: i32, %arg1: i32, %arg2: memref<1x8x128xf32, #tpu.memory_space<vmem>>, %arg3: memref<1x128xf32, #tpu.memory_space<vmem>>, %arg4: memref<1x128xf32, #tpu.memory_space<vmem>>, %arg5: memref<128x384xbf16, #tpu.memory_space<vmem>>, %arg6: memref<1x8x384xbf16, #tpu.memory_space<vmem>>) attributes {dimension_semantics = [#tpu.dimension_semantics<parallel>, #tpu.dimension_semantics<parallel>], iteration_bounds = array<i64: 2, 2>, scalar_prefetch = 0 : i64, scratch_operands = 0 : i64, tpu.core_type = #tpu.core_type<tc>, window_params = [{transform_indices = @transform_0, window_bounds = array<i64: 1, 8, 128>}, {pipeline_mode = #tpu.pipeline_mode<synchronous>, transform_indices = @transform_1, window_bounds = array<i64: 1, 128>}, {pipeline_mode = #tpu.pipeline_mode<synchronous>, transform_indices = @transform_2, window_bounds = array<i64: 1, 128>}, {pipeline_mode = #tpu.pipeline_mode<synchronous>, transform_indices = @transform_3, window_bounds = array<i64: 128, 384>}, {transform_indices = @transform_4, window_bounds = array<i64: 1, 8, 384>}]} {
    %c0 = arith.constant 0 : index
    %c0_0 = arith.constant 0 : index
    %c0_1 = arith.constant 0 : index
    %0 = vector.load %arg2[%c0, %c0_0, %c0_1] : memref<1x8x128xf32, #tpu.memory_space<vmem>>, vector<1x8x128xf32>
    %1 = vector.shape_cast %0 : vector<1x8x128xf32> to vector<8x128xf32>
    %c0_2 = arith.constant 0 : index
    %c0_3 = arith.constant 0 : index
    %2 = vector.load %arg3[%c0_2, %c0_3] : memref<1x128xf32, #tpu.memory_space<vmem>>, vector<1x128xf32>
    %3 = vector.shape_cast %2 : vector<1x128xf32> to vector<128xf32>
    %c0_4 = arith.constant 0 : index
    %c0_5 = arith.constant 0 : index
    %4 = vector.load %arg4[%c0_4, %c0_5] : memref<1x128xf32, #tpu.memory_space<vmem>>, vector<1x128xf32>
    %5 = vector.shape_cast %4 : vector<1x128xf32> to vector<128xf32>
    %cst = arith.constant dense<0.000000e+00> : vector<8xf32>
    %6 = vector.multi_reduction <add>, %1, %cst [1] : vector<8x128xf32> to vector<8xf32>
    %7 = vector.shape_cast %6 : vector<8xf32> to vector<8x1xf32>
    %cst_6 = arith.constant 1.280000e+02 : f32
    %8 = vector.broadcast %cst_6 : f32 to vector<8x1xf32>
    %9 = arith.divf %7, %8 : vector<8x1xf32>
    %10 = vector.broadcast %9 : vector<8x1xf32> to vector<8x128xf32>
    %11 = arith.subf %1, %10 : vector<8x128xf32>
    %12 = arith.mulf %11, %11 : vector<8x128xf32>
    %cst_7 = arith.constant dense<0.000000e+00> : vector<8xf32>
    %13 = vector.multi_reduction <add>, %12, %cst_7 [1] : vector<8x128xf32> to vector<8xf32>
    %14 = vector.shape_cast %13 : vector<8xf32> to vector<8x1xf32>
    %cst_8 = arith.constant 1.280000e+02 : f32
    %15 = vector.broadcast %cst_8 : f32 to vector<8x1xf32>
    %16 = arith.divf %14, %15 : vector<8x1xf32>
    %17 = vector.broadcast %9 : vector<8x1xf32> to vector<8x128xf32>
    %18 = arith.subf %1, %17 : vector<8x128xf32>
    %cst_9 = arith.constant 9.99999974E-6 : f32
    %19 = vector.broadcast %cst_9 : f32 to vector<8x1xf32>
    %20 = arith.addf %16, %19 : vector<8x1xf32>
    %21 = math.rsqrt %20 : vector<8x1xf32>
    %22 = vector.broadcast %21 : vector<8x1xf32> to vector<8x128xf32>
    %23 = arith.mulf %18, %22 : vector<8x128xf32>
    %24 = vector.shape_cast %3 : vector<128xf32> to vector<1x128xf32>
    %25 = vector.broadcast %24 : vector<1x128xf32> to vector<8x128xf32>
    %26 = arith.mulf %23, %25 : vector<8x128xf32>
    %27 = vector.shape_cast %5 : vector<128xf32> to vector<1x128xf32>
    %28 = vector.broadcast %27 : vector<1x128xf32> to vector<8x128xf32>
    %29 = arith.addf %26, %28 : vector<8x128xf32>
    %30 = arith.truncf %29 : vector<8x128xf32> to vector<8x128xbf16>
    %c0_10 = arith.constant 0 : index
    %c0_11 = arith.constant 0 : index
    %31 = vector.load %arg5[%c0_10, %c0_11] : memref<128x384xbf16, #tpu.memory_space<vmem>>, vector<128x384xbf16>
    %cst_12 = arith.constant dense<0.000000e+00> : vector<8x384xf32>
    %32 = tpu.matmul %30, %31, %cst_12 {dimension_numbers = #tpu.dot_dimension_numbers<[1], [0], [0], [1], [0, 0, 1, 1], [], []>} : vector<8x128xbf16>, vector<128x384xbf16>, vector<8x384xf32> -> vector<8x384xf32>
    %33 = arith.truncf %32 : vector<8x384xf32> to vector<8x384xbf16>
    %c0_13 = arith.constant 0 : index
    %c0_14 = arith.constant 0 : index
    %c0_15 = arith.constant 0 : index
    %34 = vector.load %arg6[%c0_13, %c0_14, %c0_15] : memref<1x8x384xbf16, #tpu.memory_space<vmem>>, vector<1x8x384xbf16>
    %35 = vector.shape_cast %34 : vector<1x8x384xbf16> to vector<8x384xbf16>
    %36 = vector.shape_cast %33 : vector<8x384xbf16> to vector<1x8x384xbf16>
    tpu.vector_store %arg6[%c0_13, %c0_14, %c0_15], %36 {strides = array<i32>} : memref<1x8x384xbf16, #tpu.memory_space<vmem>>, vector<1x8x384xbf16>,
    return
  }
  func.func @transform_0(%arg0: i32, %arg1: i32) -> (i32, i32, i32) {
    %c0_i32 = arith.constant 0 : i32
    %c0_i32_0 = arith.constant 0 : i32
    return %arg0, %arg1, %c0_i32 : i32, i32, i32
  }
  func.func @transform_1(%arg0: i32, %arg1: i32) -> (i32, i32) {
    %c0_i32 = arith.constant 0 : i32
    %c0_i32_0 = arith.constant 0 : i32
    %c0_i32_1 = arith.constant 0 : i32
    return %c0_i32, %c0_i32_0 : i32, i32
  }
  func.func @transform_2(%arg0: i32, %arg1: i32) -> (i32, i32) {
    %c0_i32 = arith.constant 0 : i32
    %c0_i32_0 = arith.constant 0 : i32
    %c0_i32_1 = arith.constant 0 : i32
    return %c0_i32, %c0_i32_0 : i32, i32
  }
  func.func @transform_3(%arg0: i32, %arg1: i32) -> (i32, i32) {
    %c0_i32 = arith.constant 0 : i32
    %c0_i32_0 = arith.constant 0 : i32
    %c0_i32_1 = arith.constant 0 : i32
    return %c0_i32, %c0_i32_0 : i32, i32
  }
  func.func @transform_4(%arg0: i32, %arg1: i32) -> (i32, i32, i32) {
    %c0_i32 = arith.constant 0 : i32
    %c0_i32_0 = arith.constant 0 : i32
    return %arg0, %arg1, %c0_i32 : i32, i32, i32
  }
}

module attributes {stable_mosaic.version = 11 : i64} {
  func.func @_qkv_proj_kernel(%arg0: i32, %arg1: i32, %arg2: memref<1x8x128xf32, #tpu.memory_space<vmem>>, %arg3: memref<1x128xf32, #tpu.memory_space<vmem>>, %arg4: memref<1x128xf32, #tpu.memory_space<vmem>>, %arg5: memref<128x384xbf16, #tpu.memory_space<vmem>>, %arg6: memref<1x8x384xbf16, #tpu.memory_space<vmem>>) attributes {dimension_semantics = [#tpu.dimension_semantics<parallel>, #tpu.dimension_semantics<parallel>], iteration_bounds = array<i64: 2, 2>, scalar_prefetch = 0 : i64, scratch_operands = 0 : i64, tpu.core_type = #tpu.core_type<tc>, window_params = [{transform_indices = @transform_0, window_bounds = array<i64: 1, 8, 128>}, {pipeline_mode = #tpu.pipeline_mode<synchronous>, transform_indices = @transform_1, window_bounds = array<i64: 1, 128>}, {pipeline_mode = #tpu.pipeline_mode<synchronous>, transform_indices = @transform_2, window_bounds = array<i64: 1, 128>}, {pipeline_mode = #tpu.pipeline_mode<synchronous>, transform_indices = @transform_3, window_bounds = array<i64: 128, 384>}, {transform_indices = @transform_4, window_bounds = array<i64: 1, 8, 384>}]} {
    %c0 = arith.constant 0 : index
    %c0_0 = arith.constant 0 : index
    %c0_1 = arith.constant 0 : index
    %0 = vector.load %arg2[%c0, %c0_0, %c0_1] : memref<1x8x128xf32, #tpu.memory_space<vmem>>, vector<1x8x128xf32>
    %1 = vector.shape_cast %0 : vector<1x8x128xf32> to vector<8x128xf32>
    %c0_2 = arith.constant 0 : index
    %c0_3 = arith.constant 0 : index
    %2 = vector.load %arg3[%c0_2, %c0_3] : memref<1x128xf32, #tpu.memory_space<vmem>>, vector<1x128xf32>
    %3 = vector.shape_cast %2 : vector<1x128xf32> to vector<128xf32>
    %c0_4 = arith.constant 0 : index
    %c0_5 = arith.constant 0 : index
    %4 = vector.load %arg4[%c0_4, %c0_5] : memref<1x128xf32, #tpu.memory_space<vmem>>, vector<1x128xf32>
    %5 = vector.shape_cast %4 : vector<1x128xf32> to vector<128xf32>
    %cst = arith.constant dense<0.000000e+00> : vector<8xf32>
    %6 = vector.multi_reduction <add>, %1, %cst [1] : vector<8x128xf32> to vector<8xf32>
    %7 = vector.shape_cast %6 : vector<8xf32> to vector<8x1xf32>
    %cst_6 = arith.constant 1.280000e+02 : f32
    %8 = vector.broadcast %cst_6 : f32 to vector<8x1xf32>
    %9 = arith.divf %7, %8 : vector<8x1xf32>
    %10 = vector.broadcast %9 : vector<8x1xf32> to vector<8x128xf32>
    %11 = arith.subf %1, %10 : vector<8x128xf32>
    %12 = arith.mulf %11, %11 : vector<8x128xf32>
    %cst_7 = arith.constant dense<0.000000e+00> : vector<8xf32>
    %13 = vector.multi_reduction <add>, %12, %cst_7 [1] : vector<8x128xf32> to vector<8xf32>
    %14 = vector.shape_cast %13 : vector<8xf32> to vector<8x1xf32>
    %cst_8 = arith.constant 1.280000e+02 : f32
    %15 = vector.broadcast %cst_8 : f32 to vector<8x1xf32>
    %16 = arith.divf %14, %15 : vector<8x1xf32>
    %17 = vector.broadcast %9 : vector<8x1xf32> to vector<8x128xf32>
    %18 = arith.subf %1, %17 : vector<8x128xf32>
    %cst_9 = arith.constant 9.99999974E-6 : f32
    %19 = vector.broadcast %cst_9 : f32 to vector<8x1xf32>
    %20 = arith.addf %16, %19 : vector<8x1xf32>
    %21 = math.rsqrt %20 : vector<8x1xf32>
    %22 = vector.broadcast %21 : vector<8x1xf32> to vector<8x128xf32>
    %23 = arith.mulf %18, %22 : vector<8x128xf32>
    %24 = vector.shape_cast %3 : vector<128xf32> to vector<1x128xf32>
    %25 = vector.broadcast %24 : vector<1x128xf32> to vector<8x128xf32>
    %26 = arith.mulf %23, %25 : vector<8x128xf32>
    %27 = vector.shape_cast %5 : vector<128xf32> to vector<1x128xf32>
    %28 = vector.broadcast %27 : vector<1x128xf32> to vector<8x128xf32>
    %29 = arith.addf %26, %28 : vector<8x128xf32>
    %30 = arith.truncf %29 : vector<8x128xf32> to vector<8x128xbf16>
    %c0_10 = arith.constant 0 : index
    %c0_11 = arith.constant 0 : index
    %31 = vector.load %arg5[%c0_10, %c0_11] : memref<128x384xbf16, #tpu.memory_space<vmem>>, vector<128x384xbf16>
    %cst_12 = arith.constant dense<0.000000e+00> : vector<8x384xf32>
    %32 = tpu.matmul %30, %31, %cst_12 {dimension_numbers = #tpu.dot_dimension_numbers<[1], [0], [0], [1], [0, 0, 1, 1], [], []>} : vector<8x128xbf16>, vector<128x384xbf16>, vector<8x384xf32> -> vector<8x384xf32>
    %33 = arith.truncf %32 : vector<8x384xf32> to vector<8x384xbf16>
    %c0_13 = arith.constant 0 : index
    %c0_14 = arith.constant 0 : index
    %c0_15 = arith.constant 0 : index
    %34 = vector.load %arg6[%c0_13, %c0_14, %c0_15] : memref<1x8x384xbf16, #tpu.memory_space<vmem>>, vector<1x8x384xbf16>
    %35 = vector.shape_cast %34 : vector<1x8x384xbf16> to vector<8x384xbf16>
    %36 = vector.shape_cast %33 : vector<8x384xbf16> to vector<1x8x384xbf16>
    tpu.vector_store %arg6[%c0_13, %c0_14, %c0_15], %36 {strides = array<i32>} : memref<1x8x384xbf16, #tpu.memory_space<vmem>>, vector<1x8x384xbf16>,
    return
  }
  func.func @transform_0(%arg0: i32, %arg1: i32) -> (i32, i32, i32) {
    %c0_i32 = arith.constant 0 : i32
    %c0_i32_0 = arith.constant 0 : i32
    return %arg0, %arg1, %c0_i32 : i32, i32, i32
  }
  func.func @transform_1(%arg0: i32, %arg1: i32) -> (i32, i32) {
    %c0_i32 = arith.constant 0 : i32
    %c0_i32_0 = arith.constant 0 : i32
    %c0_i32_1 = arith.constant 0 : i32
    return %c0_i32, %c0_i32_0 : i32, i32
  }
  func.func @transform_2(%arg0: i32, %arg1: i32) -> (i32, i32) {
    %c0_i32 = arith.constant 0 : i32
    %c0_i32_0 = arith.constant 0 : i32
    %c0_i32_1 = arith.constant 0 : i32
    return %c0_i32, %c0_i32_0 : i32, i32
  }
  func.func @transform_3(%arg0: i32, %arg1: i32) -> (i32, i32) {
    %c0_i32 = arith.constant 0 : i32
    %c0_i32_0 = arith.constant 0 : i32
    %c0_i32_1 = arith.constant 0 : i32
    return %c0_i32, %c0_i32_0 : i32, i32
  }
  func.func @transform_4(%arg0: i32, %arg1: i32) -> (i32, i32, i32) {
    %c0_i32 = arith.constant 0 : i32
    %c0_i32_0 = arith.constant 0 : i32
    return %arg0, %arg1, %c0_i32 : i32, i32, i32
  }
}

</mosaic_0001>

<llo_original>
// kernel: tpu_custom_call.1
$region0: #{tpu_custom_call.1}
  #allocation0 [shape = 'u32[]', space=smem, size = 0x4, offset = 0x4, fixed_abs, tag = 'smem constant byte address 0x4 - core index']
  #allocation1 [shape = 'u32[144,128]{1,0:T(1,128)}', space=vmem, size = 0x12000, scoped, tag = 'internal scratch']
  %s0 = inlined_call_operand.hbm [shape: f32[2,16,128], index: 0, kind: input, shape index: {}]
  %s1 = inlined_call_operand.vmem [shape: f32[1,128], index: 1, kind: input, shape index: {}]
  %s2 = inlined_call_operand.vmem [shape: f32[1,128], index: 2, kind: input, shape index: {}]
  %s3 = inlined_call_operand.hbm [shape: bf16[128,384], index: 3, kind: input, shape index: {}]
  %s4 = inlined_call_operand.hbm [shape: bf16[2,16,384], index: 4, kind: output, shape index: {}]
  %s5 = sld [smem:[#allocation0]]
  $region57: #{tpu_custom_call.1} parent=0
    _
  %s7 = ssub.s32 1, %s5
  %s8 = scalar_select 0, %s7, %s5
  $region1: #{tpu_custom_call.1} parent=0
    #allocation2 [shape = 'u8[8192]{0}', space=vmem, size = 0x2000, scoped, tag = 'input window, operand 0']
    #allocation3 [shape = 's32[2]{0}', space=sflag, size = 0x8, scoped, tag = 'scoped memory for tpu_custom_call.1']
    #allocation4 [shape = 's32[2]{0}', space=sflag, size = 0x8, scoped, tag = 'scoped memory for tpu_custom_call.1']
    #allocation5 [shape = 'u8[98304]{0}', space=vmem, size = 0x18000, scoped, tag = 'input window, operand 3, single buffered']
    #allocation6 [shape = 's32[1]{0}', space=sflag, size = 0x4, scoped, tag = 'scoped memory for tpu_custom_call.1']
    #allocation7 [shape = 'u8[12288]{0}', space=vmem, size = 0x3000, scoped, tag = 'output window, operand 0']
    %9 = vsyncpa [#allocation3], 0
    %s10 = scalar_lea.sflag [#allocation3], 1
    %11 = vsyncpa %s10, 0
    %12 = vsyncpa [#allocation6], 0
    %13 = vsyncpa [#allocation4], 0
    %s14 = scalar_lea.sflag [#allocation4], 1
    %15 = vsyncpa %s14, 0
    loop: start=0, step=1, limit=6
    $region2: #{tpu_custom_call.1} parent=1 // loop_pre_header
      _
    $region3: #{tpu_custom_call.1} parent=1 // loop_header
      %s17 = sphi 0, %s21
      %p18 = scmp.ge.s32.totalorder %s17, 6
      %s24 = sphi 0, %s36
      %s25 = sphi 0, %s32
      %s26 = sphi 0, %s24
      %s27 = sphi 0, %s25
      %s28 = sphi 0, %s26
      %s29 = sphi 0, %s27
      %s41 = sphi 0, %s43
      %s44 = sphi 0, %s41
      %s45 = sphi 0, %s44
      %s61 = sphi 0, %s45
      %s65 = sphi 0, %s65
      %s67 = sphi 0, %s65
      %s68 = sphi 0, %s67
      %s82 = sphi 0, %s68
      %s86 = sphi 0, %s86
      %s88 = sphi 0, %s86
      %s89 = sphi 0, %s88
      %s103 = sphi 0, %s89
      %s107 = sphi 0, %s107
      %s109 = sphi 0, %s107
      %s110 = sphi 0, %s109
      %s124 = sphi 0, %s110
      %s132 = sphi 0, %s134
      %s135 = sphi 0, %s132
      %s136 = sphi 0, %s135
      %s152 = sphi 0, %s136
    $region4: #{tpu_custom_call.1} parent=1 // loop_header_branch
      %20 = sbr.rel (%p18) target = $region8
    $region5: #{tpu_custom_call.1} parent=1 // loop_body
      %s22 = ssub.s32 %s17, 1
      %s23 = ssub.s32 %s17, 2
      %s30 = sadd.s32 1, %s25
      %p31 = scmp.ge.s32.totalorder %s30, 2
      %s32 = scalar_select %p31, 0, %s30
      %s33 = sadd.s32 1, %s24
      %s34 = scalar_select %p31, %s33, %s24
      %p35 = scmp.ge.s32.totalorder %s34, 2
      %s36 = scalar_select %p35, 0, %s34
      %s37 = ssub.s32 %s24, %s36
      %s38 = ssub.s32 %s25, %s32
      %s39 = sor.u32 %s37, %s38
      %p40 = scmp.eq.s32.totalorder %s39, 0
      %s42 = sadd.s32 %s41, 1
      %s43 = scalar_select %p40, %s41, %s42
      %p46 = pneg %p40
      %p47 = scmp.eq.s32.totalorder %s17, 3
      %p48 = por %p46, %p47
      %p49 = scmp.ne.s32.totalorder %s41, %s44
      %p50 = scmp.eq.s32.totalorder %s17, 0
      %p51 = por %p49, %p50
      %p52 = scmp.ne.s32.totalorder %s41, %s44
      %p53 = scmp.eq.s32.totalorder %s22, 3
      %p54 = por %p52, %p53
      %p55 = scmp.ne.s32.totalorder %s44, %s45
      %p56 = scmp.eq.s32.totalorder %s22, 0
      %p57 = por %p55, %p56
      %p58 = scmp.ne.s32.totalorder %s44, %s45
      %p59 = scmp.eq.s32.totalorder %s23, 3
      %p60 = por %p58, %p59
      %p62 = scmp.ne.s32.totalorder %s45, %s61
      %p63 = scmp.eq.s32.totalorder %s23, 0
      %p64 = por %p62, %p63
      %s66 = sadd.s32 %s65, 1
      %p69 = scmp.eq.s32.totalorder %s17, 3
      %p70 = scmp.ne.s32.totalorder %s65, %s67
      %p71 = scmp.eq.s32.totalorder %s17, 0
      %p72 = por %p70, %p71
      %p73 = scmp.ne.s32.totalorder %s65, %s67
      %p74 = scmp.eq.s32.totalorder %s22, 3
      %p75 = por %p73, %p74
      %p76 = scmp.ne.s32.totalorder %s67, %s68
      %p77 = scmp.eq.s32.totalorder %s22, 0
      %p78 = por %p76, %p77
      %p79 = scmp.ne.s32.totalorder %s67, %s68
      %p80 = scmp.eq.s32.totalorder %s23, 3
      %p81 = por %p79, %p80
      %p83 = scmp.ne.s32.totalorder %s68, %s82
      %p84 = scmp.eq.s32.totalorder %s23, 0
      %p85 = por %p83, %p84
      %s87 = sadd.s32 %s86, 1
      %p90 = scmp.eq.s32.totalorder %s17, 3
      %p91 = scmp.ne.s32.totalorder %s86, %s88
      %p92 = scmp.eq.s32.totalorder %s17, 0
      %p93 = por %p91, %p92
      %p94 = scmp.ne.s32.totalorder %s86, %s88
      %p95 = scmp.eq.s32.totalorder %s22, 3
      %p96 = por %p94, %p95
      %p97 = scmp.ne.s32.totalorder %s88, %s89
      %p98 = scmp.eq.s32.totalorder %s22, 0
      %p99 = por %p97, %p98
      %p100 = scmp.ne.s32.totalorder %s88, %s89
      %p101 = scmp.eq.s32.totalorder %s23, 3
      %p102 = por %p100, %p101
      %p104 = scmp.ne.s32.totalorder %s89, %s103
      %p105 = scmp.eq.s32.totalorder %s23, 0
      %p106 = por %p104, %p105
      %s108 = sadd.s32 %s107, 1
      %p111 = scmp.eq.s32.totalorder %s17, 3
      %p112 = scmp.ne.s32.totalorder %s107, %s109
      %p113 = scmp.eq.s32.totalorder %s17, 0
      %p114 = por %p112, %p113
      %p115 = scmp.ne.s32.totalorder %s107, %s109
      %p116 = scmp.eq.s32.totalorder %s22, 3
      %p117 = por %p115, %p116
      %p118 = scmp.ne.s32.totalorder %s109, %s110
      %p119 = scmp.eq.s32.totalorder %s22, 0
      %p120 = por %p118, %p119
      %p121 = scmp.ne.s32.totalorder %s109, %s110
      %p122 = scmp.eq.s32.totalorder %s23, 3
      %p123 = por %p121, %p122
      %p125 = scmp.ne.s32.totalorder %s110, %s124
      %p126 = scmp.eq.s32.totalorder %s23, 0
      %p127 = por %p125, %p126
      %s128 = ssub.s32 %s24, %s36
      %s129 = ssub.s32 %s25, %s32
      %s130 = sor.u32 %s128, %s129
      %p131 = scmp.eq.s32.totalorder %s130, 0
      %s133 = sadd.s32 %s132, 1
      %s134 = scalar_select %p131, %s132, %s133
      %p137 = pneg %p131
      %p138 = scmp.eq.s32.totalorder %s17, 3
      %p139 = por %p137, %p138
      %p140 = scmp.ne.s32.totalorder %s132, %s135
      %p141 = scmp.eq.s32.totalorder %s17, 0
      %p142 = por %p140, %p141
      %p143 = scmp.ne.s32.totalorder %s132, %s135
      %p144 = scmp.eq.s32.totalorder %s22, 3
      %p145 = por %p143, %p144
      %p146 = scmp.ne.s32.totalorder %s135, %s136
      %p147 = scmp.eq.s32.totalorder %s22, 0
      %p148 = por %p146, %p147
      %p149 = scmp.ne.s32.totalorder %s135, %s136
      %p150 = scmp.eq.s32.totalorder %s23, 3
      %p151 = por %p149, %p150
      %p153 = scmp.ne.s32.totalorder %s136, %s152
      %p154 = scmp.eq.s32.totalorder %s23, 0
      %p155 = por %p153, %p154
      %p156 = scmp.le.s32.totalorder 1, %s17
      %p157 = scmp.lt.s32.totalorder %s17, 5
      %p158 = pnand %p156, %p157
      %p159 = pneg %p158
      // Predicated region
      $region9: #{tpu_custom_call.1} parent=5 // pred_check
        _
      $region10: #{tpu_custom_call.1} parent=5 // pred_check_branch
        %161 = sbr.rel (%p158) target = $region12
      $region11: #{tpu_custom_call.1} parent=5 // pred_region
        %s162 = ssub.s32 %s17, 1
        // Predicated region
        $region13: #{tpu_custom_call.1} parent=11 // pred_check
          %p163 = pneg %p78
        $region14: #{tpu_custom_call.1} parent=11 // pred_check_branch
          %165 = sbr.rel (%p163) target = $region16
        $region15: #{tpu_custom_call.1} parent=11 // pred_region
          _
        $region16: #{tpu_custom_call.1} parent=11 // pred_fallthru
          _
        // Predicated region
        $region17: #{tpu_custom_call.1} parent=11 // pred_check
          %p166 = pneg %p99
        $region18: #{tpu_custom_call.1} parent=11 // pred_check_branch
          %168 = sbr.rel (%p166) target = $region20
        $region19: #{tpu_custom_call.1} parent=11 // pred_region
          _
        $region20: #{tpu_custom_call.1} parent=11 // pred_fallthru
          _
        // Predicated region
        $region21: #{tpu_custom_call.1} parent=11 // pred_check
          %p169 = pneg %p120
        $region22: #{tpu_custom_call.1} parent=11 // pred_check_branch
          %171 = sbr.rel (%p169) target = $region24
        $region23: #{tpu_custom_call.1} parent=11 // pred_region
          %s173 = ssub.s32 3072, 3072
          %174 = vsyncadd [#allocation6], %s173
          %s175 = sshll.u32 [#allocation5], 4
          %s176 = int_to_ptr.vmem [resolvable:$true] %s175
          %181 = dma.hbm_to_vmem [thread:$0]  %s3, 3072, %s176, [#allocation6], 192, 192, 12
        $region24: #{tpu_custom_call.1} parent=11 // pred_fallthru
          _
      $region12: #{tpu_custom_call.1} parent=5 // pred_fallthru
        _
      %p182 = scmp.lt.s32.totalorder %s17, 4
      // Predicated region
      $region25: #{tpu_custom_call.1} parent=5 // pred_check
        %p183 = pneg %p182
      $region26: #{tpu_custom_call.1} parent=5 // pred_check_branch
        %185 = sbr.rel (%p183) target = $region28
      $region27: #{tpu_custom_call.1} parent=5 // pred_region
        // Predicated region
        $region29: #{tpu_custom_call.1} parent=27 // pred_check
          %p186 = pneg %p51
        $region30: #{tpu_custom_call.1} parent=27 // pred_check_branch
          %188 = sbr.rel (%p186) target = $region32
        $region31: #{tpu_custom_call.1} parent=27 // pred_region
          %s189 = sand.u32 %s41, 1
          %s190 = scalar_lea.sflag [#allocation3], %s189
          %s191 = sand.u32 %s41, 1
          %s192 = smul.addr %s191, 8
          %s193 = scalar_lea.vmem [#allocation2], %s192
          %s195 = ssub.s32 128, 128
          %196 = vsyncadd %s190, %s195
          %s197 = smul.addr %s24, 2
          %s198 = sadd.s32 %s25, %s197
          %s199 = smul.addr %s198, 128
          %s200 = scalar_lea.hbm %s0, %s199
          %s202 = sshll.u32 %s193, 4
          %s203 = int_to_ptr.vmem [resolvable:$true] %s202
          %205 = dma.hbm_to_vmem [thread:$0]  %s200, 128, %s203, %s190
        $region32: #{tpu_custom_call.1} parent=27 // pred_fallthru
          _
      $region28: #{tpu_custom_call.1} parent=5 // pred_fallthru
        _
      %p206 = scmp.le.s32.totalorder 1, %s17
      %p207 = scmp.lt.s32.totalorder %s17, 5
      %p208 = pnand %p206, %p207
      %p209 = pneg %p208
      // Predicated region
      $region33: #{tpu_custom_call.1} parent=5 // pred_check
        _
      $region34: #{tpu_custom_call.1} parent=5 // pred_check_branch
        %211 = sbr.rel (%p208) target = $region36
      $region35: #{tpu_custom_call.1} parent=5 // pred_region
        %s212 = ssub.s32 %s17, 1
        %s213 = sand.u32 %s44, 1
        %s214 = scalar_lea.sflag [#allocation3], %s213
        %s215 = sand.u32 %s44, 1
        %s216 = smul.addr %s215, 8
        %s217 = scalar_lea.vmem [#allocation2], %s216
        // Predicated region
        $region37: #{tpu_custom_call.1} parent=35 // pred_check
          %p218 = pneg %p57
        $region38: #{tpu_custom_call.1} parent=35 // pred_check_branch
          %220 = sbr.rel (%p218) target = $region40
        $region39: #{tpu_custom_call.1} parent=35 // pred_region
          %221 = dma.done %s214, 128
        $region40: #{tpu_custom_call.1} parent=35 // pred_fallthru
          _
        // Predicated region
        $region41: #{tpu_custom_call.1} parent=35 // pred_check
          %p222 = pneg %p120
        $region42: #{tpu_custom_call.1} parent=35 // pred_check_branch
          %224 = sbr.rel (%p222) target = $region44
        $region43: #{tpu_custom_call.1} parent=35 // pred_region
          %225 = dma.done [#allocation6], 3072
        $region44: #{tpu_custom_call.1} parent=35 // pred_fallthru
          _
        %s226 = sand.u32 %s44, 1
        %s227 = scalar_lea.sflag [#allocation3], %s226
        %s228 = sand.u32 %s44, 1
        %s229 = smul.addr %s228, 8
        %s230 = scalar_lea.vmem [#allocation2], %s229
        %p231 = pneg %p57
        %p232 = pneg %p54
        %p233 = pneg %p78
        %p234 = pneg %p75
        %p235 = pneg %p99
        %p236 = pneg %p96
        %p237 = pneg %p120
        %p238 = pneg %p117
        %p239 = pneg %p148
        %p240 = pneg %p145
        %s241 = sand.u32 %s135, 1
        %s242 = scalar_lea.sflag [#allocation4], %s241
        %s243 = sand.u32 %s135, 1
        %s244 = smul.addr %s243, 12
        %s245 = scalar_lea.vmem [#allocation7], %s244
        %v247 = vld [vmem:[%s217] sm:$0xff]
        %v248 = vld [vmem:[%s1] sm:$0x1]
        %v249 = vld [vmem:[%s2] sm:$0x1]
        %250 = vadd.xlane.f32.xlu0 %v247
        %v251 = vpop.xlane.xlu0 %250
        %v252 = vrcp.pop 128.0
        %v253 = vmul.f32 %v251, %v252
        %v254 = vsub.f32 %v247, %v253
        %v255 = vmul.f32 %v254, %v254
        %256 = vadd.xlane.f32.xlu0 %v255
        %v257 = vpop.xlane.xlu0 %256
        %v258 = vmul.f32 %v257, %v252
        %v259 = vadd.f32 %v258, 1e-05
        %v260 = vrsqrt.pop %v259
        %v261 = vmul.f32 %v254, %v260
        %v263 = vlaneseq
        %v264 = vshrl.u32 %v263, 7
        %v265 = vsub.s32 0, %v264
        %v266 = vrot.slane %v248, %v265
        %v268 = vmul.f32 %v261, %v266
        %v270 = vlaneseq
        %v271 = vshrl.u32 %v270, 7
        %v272 = vsub.s32 0, %v271
        %v273 = vrot.slane %v249, %v272
        %v275 = vadd.f32 %v268, %v273
        %v276 = vpack.c.bf16 %v275, %v275
        %v277 = vld [vmem:[#allocation5] sm:$0xff]
        %v278 = vld [vmem:[#allocation5 + $0x8] sm:$0xf]
        %v279 = vld [vmem:[#allocation5 + $0xc] sm:$0xff]
        %v280 = vld [vmem:[#allocation5 + $0x14] sm:$0xf]
        %v281 = vld [vmem:[#allocation5 + $0x18] sm:$0xff]
        %v282 = vld [vmem:[#allocation5 + $0x20] sm:$0xf]
        %v283 = vld [vmem:[#allocation5 + $0x24] sm:$0xff]
        %v284 = vld [vmem:[#allocation5 + $0x2c] sm:$0xf]
        %v285 = vld [vmem:[#allocation5 + $0x30] sm:$0xff]
        %v286 = vld [vmem:[#allocation5 + $0x38] sm:$0xf]
        %v287 = vld [vmem:[#allocation5 + $0x3c] sm:$0xff]
        %v288 = vld [vmem:[#allocation5 + $0x44] sm:$0xf]
        %v289 = vld [vmem:[#allocation5 + $0x48] sm:$0xff]
        %v290 = vld [vmem:[#allocation5 + $0x50] sm:$0xf]
        %v291 = vld [vmem:[#allocation5 + $0x54] sm:$0xff]
        %v292 = vld [vmem:[#allocation5 + $0x5c] sm:$0xf]
        %v293 = vld [vmem:[#allocation5 + $0x60] sm:$0xff]
        %v294 = vld [vmem:[#allocation5 + $0x68] sm:$0xf]
        %v295 = vld [vmem:[#allocation5 + $0x6c] sm:$0xff]
        %v296 = vld [vmem:[#allocation5 + $0x74] sm:$0xf]
        %v297 = vld [vmem:[#allocation5 + $0x78] sm:$0xff]
        %v298 = vld [vmem:[#allocation5 + $0x80] sm:$0xf]
        %v299 = vld [vmem:[#allocation5 + $0x84] sm:$0xff]
        %v300 = vld [vmem:[#allocation5 + $0x8c] sm:$0xf]
        %v301 = vld [vmem:[#allocation5 + $0x90] sm:$0xff]
        %v302 = vld [vmem:[#allocation5 + $0x98] sm:$0xf]
        %v303 = vld [vmem:[#allocation5 + $0x9c] sm:$0xff]
        %v304 = vld [vmem:[#allocation5 + $0xa4] sm:$0xf]
        %v305 = vld [vmem:[#allocation5 + $0xa8] sm:$0xff]
        %v306 = vld [vmem:[#allocation5 + $0xb0] sm:$0xf]
        %v307 = vld [vmem:[#allocation5 + $0xb4] sm:$0xff]
        %v308 = vld [vmem:[#allocation5 + $0xbc] sm:$0xf]
        %v341 = vunpack.c.l.b16 %v277
        %v342 = vunpack.c.h.b16 %v277
        %v343 = vunpack.c.l.b16 %v278
        %v344 = vunpack.c.l.b16 %v279
        %v345 = vunpack.c.h.b16 %v279
        %v346 = vunpack.c.l.b16 %v280
        %v347 = vunpack.c.l.b16 %v281
        %v348 = vunpack.c.h.b16 %v281
        %v349 = vunpack.c.l.b16 %v282
        %v350 = vunpack.c.l.b16 %v283
        %v351 = vunpack.c.h.b16 %v283
        %v352 = vunpack.c.l.b16 %v284
        %v353 = vunpack.c.l.b16 %v285
        %v354 = vunpack.c.h.b16 %v285
        %v355 = vunpack.c.l.b16 %v286
        %v356 = vunpack.c.l.b16 %v287
        %v357 = vunpack.c.h.b16 %v287
        %v358 = vunpack.c.l.b16 %v288
        %v359 = vunpack.c.l.b16 %v289
        %v360 = vunpack.c.h.b16 %v289
        %v361 = vunpack.c.l.b16 %v290
        %v362 = vunpack.c.l.b16 %v291
        %v363 = vunpack.c.h.b16 %v291
        %v364 = vunpack.c.l.b16 %v292
        %v365 = vunpack.c.l.b16 %v293
        %v366 = vunpack.c.h.b16 %v293
        %v367 = vunpack.c.l.b16 %v294
        %v368 = vunpack.c.l.b16 %v295
        %v369 = vunpack.c.h.b16 %v295
        %v370 = vunpack.c.l.b16 %v296
        %v371 = vunpack.c.l.b16 %v297
        %v372 = vunpack.c.h.b16 %v297
        %v373 = vunpack.c.l.b16 %v298
        %v374 = vunpack.c.l.b16 %v299
        %v375 = vunpack.c.h.b16 %v299
        %v376 = vunpack.c.l.b16 %v300
        %v377 = vunpack.c.l.b16 %v301
        %v378 = vunpack.c.h.b16 %v301
        %v379 = vunpack.c.l.b16 %v302
        %v380 = vunpack.c.l.b16 %v303
        %v381 = vunpack.c.h.b16 %v303
        %v382 = vunpack.c.l.b16 %v304
        %v383 = vunpack.c.l.b16 %v305
        %v384 = vunpack.c.h.b16 %v305
        %v385 = vunpack.c.l.b16 %v306
        %v386 = vunpack.c.l.b16 %v307
        %v387 = vunpack.c.h.b16 %v307
        %v388 = vunpack.c.l.b16 %v308
        %v389 = vpack.c.b16 %v344, %v341
        %v390 = vpack.c.b16 %v345, %v342
        %v391 = vpack.c.b16 %v346, %v343
        %v392 = vpack.c.b16 %v350, %v347
        %v393 = vpack.c.b16 %v351, %v348
        %v394 = vpack.c.b16 %v352, %v349
        %v395 = vpack.c.b16 %v356, %v353
        %v396 = vpack.c.b16 %v357, %v354
        %v397 = vpack.c.b16 %v358, %v355
        %v398 = vpack.c.b16 %v362, %v359
        %v399 = vpack.c.b16 %v363, %v360
        %v400 = vpack.c.b16 %v364, %v361
        %v401 = vpack.c.b16 %v368, %v365
        %v402 = vpack.c.b16 %v369, %v366
        %v403 = vpack.c.b16 %v370, %v367
        %v404 = vpack.c.b16 %v374, %v371
        %v405 = vpack.c.b16 %v375, %v372
        %v406 = vpack.c.b16 %v376, %v373
        %v407 = vpack.c.b16 %v380, %v377
        %v408 = vpack.c.b16 %v381, %v378
        %v409 = vpack.c.b16 %v382, %v379
        %v410 = vpack.c.b16 %v386, %v383
        %v411 = vpack.c.b16 %v387, %v384
        %v412 = vpack.c.b16 %v388, %v385
        %437 = vmatprep.subr.bf16.mxu0 %v390
        %438 = vmatpush1.bf16.msra.mxu0 %v389
        %439 = vmatprep.subr.bf16.mxu0 %v393
        %440 = vmatpush1.bf16.msra.mxu0 %v392
        %441 = vmatprep.subr.bf16.mxu0 %v396
        %442 = vmatpush1.bf16.msra.mxu0 %v395
        %443 = vmatprep.subr.bf16.mxu0 %v399
        %444 = vmatpush1.bf16.msra.mxu0 %v398
        %445 = vmatprep.subr.bf16.mxu0 %v402
        %446 = vmatpush1.bf16.msra.mxu0 %v401
        %447 = vmatprep.subr.bf16.mxu0 %v405
        %448 = vmatpush1.bf16.msra.mxu0 %v404
        %449 = vmatprep.subr.bf16.mxu0 %v408
        %450 = vmatpush1.bf16.msra.mxu0 %v407
        %451 = vmatprep.subr.bf16.mxu0 %v411
        %452 = vmatpush1.bf16.msra.mxu0 %v410
        %453 = vmatprep.subr.bf16.mxu0 0
        %454 = vmatpush1.bf16.msra.mxu0 0
        %455 = vmatprep.subr.bf16.mxu0 0
        %456 = vmatpush1.bf16.msra.mxu0 0
        %457 = vmatprep.subr.bf16.mxu0 0
        %458 = vmatpush1.bf16.msra.mxu0 0
        %459 = vmatprep.subr.bf16.mxu0 0
        %460 = vmatpush1.bf16.msra.mxu0 0
        %461 = vmatprep.subr.bf16.mxu0 0
        %462 = vmatpush1.bf16.msra.mxu0 0
        %463 = vmatprep.subr.bf16.mxu0 0
        %464 = vmatpush1.bf16.msra.mxu0 0
        %465 = vmatprep.subr.bf16.mxu0 0
        %466 = vmatpush1.bf16.msra.mxu0 0
        %467 = vmatprep.subr.bf16.mxu0 0
        %468 = vmatpush1.bf16.msra.mxu0 0
        %469 = vmatprep.mubr.bf16.mxu0 0
        %470 = vmatmul.mubr.bf16.gmra.mrb[0].mxu0 %v276
        %v471 = vpop.f32.mrb[0].mxu0
        %v472 = vadd.f32 0.0, %v471
        %v473 = vpop.f32.mrb[0].mxu0
        %v474 = vadd.f32 0.0, %v473
        %v475 = vpop.f32.mrb[0].mxu0
        %v476 = vpop.f32.mrb[0].mxu0
        %477 = vdwg.mxu0
        %478 = vmatprep.subr.bf16.mxu0 0
        %479 = vmatpush1.bf16.msra.mxu0 %v391
        %480 = vmatprep.subr.bf16.mxu0 0
        %481 = vmatpush1.bf16.msra.mxu0 %v394
        %482 = vmatprep.subr.bf16.mxu0 0
        %483 = vmatpush1.bf16.msra.mxu0 %v397
        %484 = vmatprep.subr.bf16.mxu0 0
        %485 = vmatpush1.bf16.msra.mxu0 %v400
        %486 = vmatprep.subr.bf16.mxu0 0
        %487 = vmatpush1.bf16.msra.mxu0 %v403
        %488 = vmatprep.subr.bf16.mxu0 0
        %489 = vmatpush1.bf16.msra.mxu0 %v406
        %490 = vmatprep.subr.bf16.mxu0 0
        %491 = vmatpush1.bf16.msra.mxu0 %v409
        %492 = vmatprep.subr.bf16.mxu0 0
        %493 = vmatpush1.bf16.msra.mxu0 %v412
        %494 = vmatprep.subr.bf16.mxu0 0
        %495 = vmatpush1.bf16.msra.mxu0 0
        %496 = vmatprep.subr.bf16.mxu0 0
        %497 = vmatpush1.bf16.msra.mxu0 0
        %498 = vmatprep.subr.bf16.mxu0 0
        %499 = vmatpush1.bf16.msra.mxu0 0
        %500 = vmatprep.subr.bf16.mxu0 0
        %501 = vmatpush1.bf16.msra.mxu0 0
        %502 = vmatprep.subr.bf16.mxu0 0
        %503 = vmatpush1.bf16.msra.mxu0 0
        %504 = vmatprep.subr.bf16.mxu0 0
        %505 = vmatpush1.bf16.msra.mxu0 0
        %506 = vmatprep.subr.bf16.mxu0 0
        %507 = vmatpush1.bf16.msra.mxu0 0
        %508 = vmatprep.subr.bf16.mxu0 0
        %509 = vmatpush1.bf16.msra.mxu0 0
        %510 = vmatprep.mubr.bf16.mxu0 0
        %511 = vmatmul.mubr.bf16.gmra.mrb[0].mxu0 %v276
        %v512 = vpop.f32.mrb[0].mxu0
        %v513 = vadd.f32 0.0, %v512
        %v514 = vpop.f32.mrb[0].mxu0
        %v515 = vpop.f32.mrb[0].mxu0
        %v516 = vpop.f32.mrb[0].mxu0
        %517 = vdwg.mxu0
        %v518 = vpack.c.bf16 %v472, %v472
        %v519 = vpack.c.bf16 %v474, %v474
        %v520 = vpack.c.bf16 %v513, %v513
        %v524 = vunpack.c.l.b16 %v518
        %v525 = vunpack.c.l.b16 %v519
        %v526 = vunpack.c.l.b16 %v520
        %v527 = vpack.c.b16 %v525, %v524
        %v528 = vpack.c.b16 %v526, %v526
        %531 = vst [vmem:[%s245] sm:$0xff] %v527
        %532 = vst [vmem:[%s245 + $0x8] sm:$0xf] %v528
        %s533 = sand.u32 %s135, 1
        %s534 = scalar_lea.sflag [#allocation4], %s533
        %s535 = sand.u32 %s135, 1
        %s536 = smul.addr %s535, 12
        %s537 = scalar_lea.vmem [#allocation7], %s536
        // Predicated region
        $region45: #{tpu_custom_call.1} parent=35 // pred_check
          %p538 = pneg %p145
        $region46: #{tpu_custom_call.1} parent=35 // pred_check_branch
          %540 = sbr.rel (%p538) target = $region48
        $region47: #{tpu_custom_call.1} parent=35 // pred_region
          %s542 = ssub.s32 192, 192
          %543 = vsyncadd %s534, %s542
          %s544 = smul.addr %s27, 3
          %s545 = smul.addr %s26, 6
          %s546 = sadd.s32 %s544, %s545
          %s547 = smul.addr %s546, 64
          %s548 = scalar_lea.hbm %s4, %s547
          %s550 = sshll.u32 %s537, 4
          %s551 = int_to_ptr.vmem [resolvable:$true] %s550
          %553 = dma.vmem_to_hbm [thread:$0]  %s551, 192, %s548, %s534
        $region48: #{tpu_custom_call.1} parent=35 // pred_fallthru
          _
      $region36: #{tpu_custom_call.1} parent=5 // pred_fallthru
        _
      %p554 = scmp.le.s32.totalorder 2, %s17
      // Predicated region
      $region49: #{tpu_custom_call.1} parent=5 // pred_check
        %p555 = pneg %p554
      $region50: #{tpu_custom_call.1} parent=5 // pred_check_branch
        %557 = sbr.rel (%p555) target = $region52
      $region51: #{tpu_custom_call.1} parent=5 // pred_region
        %s558 = ssub.s32 %s17, 2
        // Predicated region
        $region53: #{tpu_custom_call.1} parent=51 // pred_check
          %p559 = pneg %p151
        $region54: #{tpu_custom_call.1} parent=51 // pred_check_branch
          %561 = sbr.rel (%p559) target = $region56
        $region55: #{tpu_custom_call.1} parent=51 // pred_region
          %s562 = sand.u32 %s136, 1
          %s563 = scalar_lea.sflag [#allocation4], %s562
          %s564 = sand.u32 %s136, 1
          %s565 = smul.addr %s564, 12
          %s566 = scalar_lea.vmem [#allocation7], %s565
          %567 = dma.done %s563, 192
        $region56: #{tpu_custom_call.1} parent=51 // pred_fallthru
          _
      $region52: #{tpu_custom_call.1} parent=5 // pred_fallthru
        _
    $region6: #{tpu_custom_call.1} parent=1 // loop_footer
      %s21 = sadd.s32 1, %s17
    $region7: #{tpu_custom_call.1} parent=1 // loop_footer_branch
      %16 = sbr.rel target = $region3
    $region8: #{tpu_custom_call.1} parent=1 // loop_exit
      _
    %568 = vsyncpa [#allocation3], 1
    %s569 = scalar_lea.sflag [#allocation3], 1
    %570 = vsyncpa %s569, 1
    %571 = vsyncpa [#allocation6], 1
    %572 = vsyncpa [#allocation4], 1
    %s573 = scalar_lea.sflag [#allocation4], 1
    %574 = vsyncpa %s573, 1

// kernel: tpu_custom_call.1
$region0: #{tpu_custom_call.1}
  #allocation0 [shape = 'u32[]', space=smem, size = 0x4, offset = 0x4, fixed_abs, tag = 'smem constant byte address 0x4 - core index']
  #allocation1 [shape = 'u32[144,128]{1,0:T(1,128)}', space=vmem, size = 0x12000, scoped, tag = 'internal scratch']
  %s0 = inlined_call_operand.hbm [shape: f32[2,16,128], index: 0, kind: input, shape index: {}]
  %s1 = inlined_call_operand.vmem [shape: f32[1,128], index: 1, kind: input, shape index: {}]
  %s2 = inlined_call_operand.vmem [shape: f32[1,128], index: 2, kind: input, shape index: {}]
  %s3 = inlined_call_operand.hbm [shape: bf16[128,384], index: 3, kind: input, shape index: {}]
  %s4 = inlined_call_operand.hbm [shape: bf16[2,16,384], index: 4, kind: output, shape index: {}]
  %s5 = sld [smem:[#allocation0]]
  $region57: #{tpu_custom_call.1} parent=0
    _
  %s7 = ssub.s32 1, %s5
  %s8 = scalar_select 0, %s7, %s5
  $region1: #{tpu_custom_call.1} parent=0
    #allocation2 [shape = 'u8[8192]{0}', space=vmem, size = 0x2000, scoped, tag = 'input window, operand 0']
    #allocation3 [shape = 's32[2]{0}', space=sflag, size = 0x8, scoped, tag = 'scoped memory for tpu_custom_call.1']
    #allocation4 [shape = 's32[2]{0}', space=sflag, size = 0x8, scoped, tag = 'scoped memory for tpu_custom_call.1']
    #allocation5 [shape = 'u8[98304]{0}', space=vmem, size = 0x18000, scoped, tag = 'input window, operand 3, single buffered']
    #allocation6 [shape = 's32[1]{0}', space=sflag, size = 0x4, scoped, tag = 'scoped memory for tpu_custom_call.1']
    #allocation7 [shape = 'u8[12288]{0}', space=vmem, size = 0x3000, scoped, tag = 'output window, operand 0']
    %9 = vsyncpa [#allocation3], 0
    %s10 = scalar_lea.sflag [#allocation3], 1
    %11 = vsyncpa %s10, 0
    %12 = vsyncpa [#allocation6], 0
    %13 = vsyncpa [#allocation4], 0
    %s14 = scalar_lea.sflag [#allocation4], 1
    %15 = vsyncpa %s14, 0
    loop: start=0, step=1, limit=6
    $region2: #{tpu_custom_call.1} parent=1 // loop_pre_header
      _
    $region3: #{tpu_custom_call.1} parent=1 // loop_header
      %s17 = sphi 0, %s21
      %p18 = scmp.ge.s32.totalorder %s17, 6
      %s24 = sphi 0, %s36
      %s25 = sphi 0, %s32
      %s26 = sphi 0, %s24
      %s27 = sphi 0, %s25
      %s28 = sphi 0, %s26
      %s29 = sphi 0, %s27
      %s41 = sphi 0, %s43
      %s44 = sphi 0, %s41
      %s45 = sphi 0, %s44
      %s61 = sphi 0, %s45
      %s65 = sphi 0, %s65
      %s67 = sphi 0, %s65
      %s68 = sphi 0, %s67
      %s82 = sphi 0, %s68
      %s86 = sphi 0, %s86
      %s88 = sphi 0, %s86
      %s89 = sphi 0, %s88
      %s103 = sphi 0, %s89
      %s107 = sphi 0, %s107
      %s109 = sphi 0, %s107
      %s110 = sphi 0, %s109
      %s124 = sphi 0, %s110
      %s132 = sphi 0, %s134
      %s135 = sphi 0, %s132
      %s136 = sphi 0, %s135
      %s152 = sphi 0, %s136
    $region4: #{tpu_custom_call.1} parent=1 // loop_header_branch
      %20 = sbr.rel (%p18) target = $region8
    $region5: #{tpu_custom_call.1} parent=1 // loop_body
      %s22 = ssub.s32 %s17, 1
      %s23 = ssub.s32 %s17, 2
      %s30 = sadd.s32 1, %s25
      %p31 = scmp.ge.s32.totalorder %s30, 2
      %s32 = scalar_select %p31, 0, %s30
      %s33 = sadd.s32 1, %s24
      %s34 = scalar_select %p31, %s33, %s24
      %p35 = scmp.ge.s32.totalorder %s34, 2
      %s36 = scalar_select %p35, 0, %s34
      %s37 = ssub.s32 %s24, %s36
      %s38 = ssub.s32 %s25, %s32
      %s39 = sor.u32 %s37, %s38
      %p40 = scmp.eq.s32.totalorder %s39, 0
      %s42 = sadd.s32 %s41, 1
      %s43 = scalar_select %p40, %s41, %s42
      %p46 = pneg %p40
      %p47 = scmp.eq.s32.totalorder %s17, 3
      %p48 = por %p46, %p47
      %p49 = scmp.ne.s32.totalorder %s41, %s44
      %p50 = scmp.eq.s32.totalorder %s17, 0
      %p51 = por %p49, %p50
      %p52 = scmp.ne.s32.totalorder %s41, %s44
      %p53 = scmp.eq.s32.totalorder %s22, 3
      %p54 = por %p52, %p53
      %p55 = scmp.ne.s32.totalorder %s44, %s45
      %p56 = scmp.eq.s32.totalorder %s22, 0
      %p57 = por %p55, %p56
      %p58 = scmp.ne.s32.totalorder %s44, %s45
      %p59 = scmp.eq.s32.totalorder %s23, 3
      %p60 = por %p58, %p59
      %p62 = scmp.ne.s32.totalorder %s45, %s61
      %p63 = scmp.eq.s32.totalorder %s23, 0
      %p64 = por %p62, %p63
      %s66 = sadd.s32 %s65, 1
      %p69 = scmp.eq.s32.totalorder %s17, 3
      %p70 = scmp.ne.s32.totalorder %s65, %s67
      %p71 = scmp.eq.s32.totalorder %s17, 0
      %p72 = por %p70, %p71
      %p73 = scmp.ne.s32.totalorder %s65, %s67
      %p74 = scmp.eq.s32.totalorder %s22, 3
      %p75 = por %p73, %p74
      %p76 = scmp.ne.s32.totalorder %s67, %s68
      %p77 = scmp.eq.s32.totalorder %s22, 0
      %p78 = por %p76, %p77
      %p79 = scmp.ne.s32.totalorder %s67, %s68
      %p80 = scmp.eq.s32.totalorder %s23, 3
      %p81 = por %p79, %p80
      %p83 = scmp.ne.s32.totalorder %s68, %s82
      %p84 = scmp.eq.s32.totalorder %s23, 0
      %p85 = por %p83, %p84
      %s87 = sadd.s32 %s86, 1
      %p90 = scmp.eq.s32.totalorder %s17, 3
      %p91 = scmp.ne.s32.totalorder %s86, %s88
      %p92 = scmp.eq.s32.totalorder %s17, 0
      %p93 = por %p91, %p92
      %p94 = scmp.ne.s32.totalorder %s86, %s88
      %p95 = scmp.eq.s32.totalorder %s22, 3
      %p96 = por %p94, %p95
      %p97 = scmp.ne.s32.totalorder %s88, %s89
      %p98 = scmp.eq.s32.totalorder %s22, 0
      %p99 = por %p97, %p98
      %p100 = scmp.ne.s32.totalorder %s88, %s89
      %p101 = scmp.eq.s32.totalorder %s23, 3
      %p102 = por %p100, %p101
      %p104 = scmp.ne.s32.totalorder %s89, %s103
      %p105 = scmp.eq.s32.totalorder %s23, 0
      %p106 = por %p104, %p105
      %s108 = sadd.s32 %s107, 1
      %p111 = scmp.eq.s32.totalorder %s17, 3
      %p112 = scmp.ne.s32.totalorder %s107, %s109
      %p113 = scmp.eq.s32.totalorder %s17, 0
      %p114 = por %p112, %p113
      %p115 = scmp.ne.s32.totalorder %s107, %s109
      %p116 = scmp.eq.s32.totalorder %s22, 3
      %p117 = por %p115, %p116
      %p118 = scmp.ne.s32.totalorder %s109, %s110
      %p119 = scmp.eq.s32.totalorder %s22, 0
      %p120 = por %p118, %p119
      %p121 = scmp.ne.s32.totalorder %s109, %s110
      %p122 = scmp.eq.s32.totalorder %s23, 3
      %p123 = por %p121, %p122
      %p125 = scmp.ne.s32.totalorder %s110, %s124
      %p126 = scmp.eq.s32.totalorder %s23, 0
      %p127 = por %p125, %p126
      %s128 = ssub.s32 %s24, %s36
      %s129 = ssub.s32 %s25, %s32
      %s130 = sor.u32 %s128, %s129
      %p131 = scmp.eq.s32.totalorder %s130, 0
      %s133 = sadd.s32 %s132, 1
      %s134 = scalar_select %p131, %s132, %s133
      %p137 = pneg %p131
      %p138 = scmp.eq.s32.totalorder %s17, 3
      %p139 = por %p137, %p138
      %p140 = scmp.ne.s32.totalorder %s132, %s135
      %p141 = scmp.eq.s32.totalorder %s17, 0
      %p142 = por %p140, %p141
      %p143 = scmp.ne.s32.totalorder %s132, %s135
      %p144 = scmp.eq.s32.totalorder %s22, 3
      %p145 = por %p143, %p144
      %p146 = scmp.ne.s32.totalorder %s135, %s136
      %p147 = scmp.eq.s32.totalorder %s22, 0
      %p148 = por %p146, %p147
      %p149 = scmp.ne.s32.totalorder %s135, %s136
      %p150 = scmp.eq.s32.totalorder %s23, 3
      %p151 = por %p149, %p150
      %p153 = scmp.ne.s32.totalorder %s136, %s152
      %p154 = scmp.eq.s32.totalorder %s23, 0
      %p155 = por %p153, %p154
      %p156 = scmp.le.s32.totalorder 1, %s17
      %p157 = scmp.lt.s32.totalorder %s17, 5
      %p158 = pnand %p156, %p157
      %p159 = pneg %p158
      // Predicated region
      $region9: #{tpu_custom_call.1} parent=5 // pred_check
        _
      $region10: #{tpu_custom_call.1} parent=5 // pred_check_branch
        %161 = sbr.rel (%p158) target = $region12
      $region11: #{tpu_custom_call.1} parent=5 // pred_region
        %s162 = ssub.s32 %s17, 1
        // Predicated region
        $region13: #{tpu_custom_call.1} parent=11 // pred_check
          %p163 = pneg %p78
        $region14: #{tpu_custom_call.1} parent=11 // pred_check_branch
          %165 = sbr.rel (%p163) target = $region16
        $region15: #{tpu_custom_call.1} parent=11 // pred_region
          _
        $region16: #{tpu_custom_call.1} parent=11 // pred_fallthru
          _
        // Predicated region
        $region17: #{tpu_custom_call.1} parent=11 // pred_check
          %p166 = pneg %p99
        $region18: #{tpu_custom_call.1} parent=11 // pred_check_branch
          %168 = sbr.rel (%p166) target = $region20
        $region19: #{tpu_custom_call.1} parent=11 // pred_region
          _
        $region20: #{tpu_custom_call.1} parent=11 // pred_fallthru
          _
        // Predicated region
        $region21: #{tpu_custom_call.1} parent=11 // pred_check
          %p169 = pneg %p120
        $region22: #{tpu_custom_call.1} parent=11 // pred_check_branch
          %171 = sbr.rel (%p169) target = $region24
        $region23: #{tpu_custom_call.1} parent=11 // pred_region
          %s173 = ssub.s32 3072, 3072
          %174 = vsyncadd [#allocation6], %s173
          %s175 = sshll.u32 [#allocation5], 4
          %s176 = int_to_ptr.vmem [resolvable:$true] %s175
          %181 = dma.hbm_to_vmem [thread:$0]  %s3, 3072, %s176, [#allocation6], 192, 192, 12
        $region24: #{tpu_custom_call.1} parent=11 // pred_fallthru
          _
      $region12: #{tpu_custom_call.1} parent=5 // pred_fallthru
        _
      %p182 = scmp.lt.s32.totalorder %s17, 4
      // Predicated region
      $region25: #{tpu_custom_call.1} parent=5 // pred_check
        %p183 = pneg %p182
      $region26: #{tpu_custom_call.1} parent=5 // pred_check_branch
        %185 = sbr.rel (%p183) target = $region28
      $region27: #{tpu_custom_call.1} parent=5 // pred_region
        // Predicated region
        $region29: #{tpu_custom_call.1} parent=27 // pred_check
          %p186 = pneg %p51
        $region30: #{tpu_custom_call.1} parent=27 // pred_check_branch
          %188 = sbr.rel (%p186) target = $region32
        $region31: #{tpu_custom_call.1} parent=27 // pred_region
          %s189 = sand.u32 %s41, 1
          %s190 = scalar_lea.sflag [#allocation3], %s189
          %s191 = sand.u32 %s41, 1
          %s192 = smul.addr %s191, 8
          %s193 = scalar_lea.vmem [#allocation2], %s192
          %s195 = ssub.s32 128, 128
          %196 = vsyncadd %s190, %s195
          %s197 = smul.addr %s24, 2
          %s198 = sadd.s32 %s25, %s197
          %s199 = smul.addr %s198, 128
          %s200 = scalar_lea.hbm %s0, %s199
          %s202 = sshll.u32 %s193, 4
          %s203 = int_to_ptr.vmem [resolvable:$true] %s202
          %205 = dma.hbm_to_vmem [thread:$0]  %s200, 128, %s203, %s190
        $region32: #{tpu_custom_call.1} parent=27 // pred_fallthru
          _
      $region28: #{tpu_custom_call.1} parent=5 // pred_fallthru
        _
      %p206 = scmp.le.s32.totalorder 1, %s17
      %p207 = scmp.lt.s32.totalorder %s17, 5
      %p208 = pnand %p206, %p207
      %p209 = pneg %p208
      // Predicated region
      $region33: #{tpu_custom_call.1} parent=5 // pred_check
        _
      $region34: #{tpu_custom_call.1} parent=5 // pred_check_branch
        %211 = sbr.rel (%p208) target = $region36
      $region35: #{tpu_custom_call.1} parent=5 // pred_region
        %s212 = ssub.s32 %s17, 1
        %s213 = sand.u32 %s44, 1
        %s214 = scalar_lea.sflag [#allocation3], %s213
        %s215 = sand.u32 %s44, 1
        %s216 = smul.addr %s215, 8
        %s217 = scalar_lea.vmem [#allocation2], %s216
        // Predicated region
        $region37: #{tpu_custom_call.1} parent=35 // pred_check
          %p218 = pneg %p57
        $region38: #{tpu_custom_call.1} parent=35 // pred_check_branch
          %220 = sbr.rel (%p218) target = $region40
        $region39: #{tpu_custom_call.1} parent=35 // pred_region
          %221 = dma.done %s214, 128
        $region40: #{tpu_custom_call.1} parent=35 // pred_fallthru
          _
        // Predicated region
        $region41: #{tpu_custom_call.1} parent=35 // pred_check
          %p222 = pneg %p120
        $region42: #{tpu_custom_call.1} parent=35 // pred_check_branch
          %224 = sbr.rel (%p222) target = $region44
        $region43: #{tpu_custom_call.1} parent=35 // pred_region
          %225 = dma.done [#allocation6], 3072
        $region44: #{tpu_custom_call.1} parent=35 // pred_fallthru
          _
        %s226 = sand.u32 %s44, 1
        %s227 = scalar_lea.sflag [#allocation3], %s226
        %s228 = sand.u32 %s44, 1
        %s229 = smul.addr %s228, 8
        %s230 = scalar_lea.vmem [#allocation2], %s229
        %p231 = pneg %p57
        %p232 = pneg %p54
        %p233 = pneg %p78
        %p234 = pneg %p75
        %p235 = pneg %p99
        %p236 = pneg %p96
        %p237 = pneg %p120
        %p238 = pneg %p117
        %p239 = pneg %p148
        %p240 = pneg %p145
        %s241 = sand.u32 %s135, 1
        %s242 = scalar_lea.sflag [#allocation4], %s241
        %s243 = sand.u32 %s135, 1
        %s244 = smul.addr %s243, 12
        %s245 = scalar_lea.vmem [#allocation7], %s244
        %v247 = vld [vmem:[%s217] sm:$0xff]
        %v248 = vld [vmem:[%s1] sm:$0x1]
        %v249 = vld [vmem:[%s2] sm:$0x1]
        %250 = vadd.xlane.f32.xlu0 %v247
        %v251 = vpop.xlane.xlu0 %250
        %v252 = vrcp.pop 128.0
        %v253 = vmul.f32 %v251, %v252
        %v254 = vsub.f32 %v247, %v253
        %v255 = vmul.f32 %v254, %v254
        %256 = vadd.xlane.f32.xlu0 %v255
        %v257 = vpop.xlane.xlu0 %256
        %v258 = vmul.f32 %v257, %v252
        %v259 = vadd.f32 %v258, 1e-05
        %v260 = vrsqrt.pop %v259
        %v261 = vmul.f32 %v254, %v260
        %v263 = vlaneseq
        %v264 = vshrl.u32 %v263, 7
        %v265 = vsub.s32 0, %v264
        %v266 = vrot.slane %v248, %v265
        %v268 = vmul.f32 %v261, %v266
        %v270 = vlaneseq
        %v271 = vshrl.u32 %v270, 7
        %v272 = vsub.s32 0, %v271
        %v273 = vrot.slane %v249, %v272
        %v275 = vadd.f32 %v268, %v273
        %v276 = vpack.c.bf16 %v275, %v275
        %v277 = vld [vmem:[#allocation5] sm:$0xff]
        %v278 = vld [vmem:[#allocation5 + $0x8] sm:$0xf]
        %v279 = vld [vmem:[#allocation5 + $0xc] sm:$0xff]
        %v280 = vld [vmem:[#allocation5 + $0x14] sm:$0xf]
        %v281 = vld [vmem:[#allocation5 + $0x18] sm:$0xff]
        %v282 = vld [vmem:[#allocation5 + $0x20] sm:$0xf]
        %v283 = vld [vmem:[#allocation5 + $0x24] sm:$0xff]
        %v284 = vld [vmem:[#allocation5 + $0x2c] sm:$0xf]
        %v285 = vld [vmem:[#allocation5 + $0x30] sm:$0xff]
        %v286 = vld [vmem:[#allocation5 + $0x38] sm:$0xf]
        %v287 = vld [vmem:[#allocation5 + $0x3c] sm:$0xff]
        %v288 = vld [vmem:[#allocation5 + $0x44] sm:$0xf]
        %v289 = vld [vmem:[#allocation5 + $0x48] sm:$0xff]
        %v290 = vld [vmem:[#allocation5 + $0x50] sm:$0xf]
        %v291 = vld [vmem:[#allocation5 + $0x54] sm:$0xff]
        %v292 = vld [vmem:[#allocation5 + $0x5c] sm:$0xf]
        %v293 = vld [vmem:[#allocation5 + $0x60] sm:$0xff]
        %v294 = vld [vmem:[#allocation5 + $0x68] sm:$0xf]
        %v295 = vld [vmem:[#allocation5 + $0x6c] sm:$0xff]
        %v296 = vld [vmem:[#allocation5 + $0x74] sm:$0xf]
        %v297 = vld [vmem:[#allocation5 + $0x78] sm:$0xff]
        %v298 = vld [vmem:[#allocation5 + $0x80] sm:$0xf]
        %v299 = vld [vmem:[#allocation5 + $0x84] sm:$0xff]
        %v300 = vld [vmem:[#allocation5 + $0x8c] sm:$0xf]
        %v301 = vld [vmem:[#allocation5 + $0x90] sm:$0xff]
        %v302 = vld [vmem:[#allocation5 + $0x98] sm:$0xf]
        %v303 = vld [vmem:[#allocation5 + $0x9c] sm:$0xff]
        %v304 = vld [vmem:[#allocation5 + $0xa4] sm:$0xf]
        %v305 = vld [vmem:[#allocation5 + $0xa8] sm:$0xff]
        %v306 = vld [vmem:[#allocation5 + $0xb0] sm:$0xf]
        %v307 = vld [vmem:[#allocation5 + $0xb4] sm:$0xff]
        %v308 = vld [vmem:[#allocation5 + $0xbc] sm:$0xf]
        %v341 = vunpack.c.l.b16 %v277
        %v342 = vunpack.c.h.b16 %v277
        %v343 = vunpack.c.l.b16 %v278
        %v344 = vunpack.c.l.b16 %v279
        %v345 = vunpack.c.h.b16 %v279
        %v346 = vunpack.c.l.b16 %v280
        %v347 = vunpack.c.l.b16 %v281
        %v348 = vunpack.c.h.b16 %v281
        %v349 = vunpack.c.l.b16 %v282
        %v350 = vunpack.c.l.b16 %v283
        %v351 = vunpack.c.h.b16 %v283
        %v352 = vunpack.c.l.b16 %v284
        %v353 = vunpack.c.l.b16 %v285
        %v354 = vunpack.c.h.b16 %v285
        %v355 = vunpack.c.l.b16 %v286
        %v356 = vunpack.c.l.b16 %v287
        %v357 = vunpack.c.h.b16 %v287
        %v358 = vunpack.c.l.b16 %v288
        %v359 = vunpack.c.l.b16 %v289
        %v360 = vunpack.c.h.b16 %v289
        %v361 = vunpack.c.l.b16 %v290
        %v362 = vunpack.c.l.b16 %v291
        %v363 = vunpack.c.h.b16 %v291
        %v364 = vunpack.c.l.b16 %v292
        %v365 = vunpack.c.l.b16 %v293
        %v366 = vunpack.c.h.b16 %v293
        %v367 = vunpack.c.l.b16 %v294
        %v368 = vunpack.c.l.b16 %v295
        %v369 = vunpack.c.h.b16 %v295
        %v370 = vunpack.c.l.b16 %v296
        %v371 = vunpack.c.l.b16 %v297
        %v372 = vunpack.c.h.b16 %v297
        %v373 = vunpack.c.l.b16 %v298
        %v374 = vunpack.c.l.b16 %v299
        %v375 = vunpack.c.h.b16 %v299
        %v376 = vunpack.c.l.b16 %v300
        %v377 = vunpack.c.l.b16 %v301
        %v378 = vunpack.c.h.b16 %v301
        %v379 = vunpack.c.l.b16 %v302
        %v380 = vunpack.c.l.b16 %v303
        %v381 = vunpack.c.h.b16 %v303
        %v382 = vunpack.c.l.b16 %v304
        %v383 = vunpack.c.l.b16 %v305
        %v384 = vunpack.c.h.b16 %v305
        %v385 = vunpack.c.l.b16 %v306
        %v386 = vunpack.c.l.b16 %v307
        %v387 = vunpack.c.h.b16 %v307
        %v388 = vunpack.c.l.b16 %v308
        %v389 = vpack.c.b16 %v344, %v341
        %v390 = vpack.c.b16 %v345, %v342
        %v391 = vpack.c.b16 %v346, %v343
        %v392 = vpack.c.b16 %v350, %v347
        %v393 = vpack.c.b16 %v351, %v348
        %v394 = vpack.c.b16 %v352, %v349
        %v395 = vpack.c.b16 %v356, %v353
        %v396 = vpack.c.b16 %v357, %v354
        %v397 = vpack.c.b16 %v358, %v355
        %v398 = vpack.c.b16 %v362, %v359
        %v399 = vpack.c.b16 %v363, %v360
        %v400 = vpack.c.b16 %v364, %v361
        %v401 = vpack.c.b16 %v368, %v365
        %v402 = vpack.c.b16 %v369, %v366
        %v403 = vpack.c.b16 %v370, %v367
        %v404 = vpack.c.b16 %v374, %v371
        %v405 = vpack.c.b16 %v375, %v372
        %v406 = vpack.c.b16 %v376, %v373
        %v407 = vpack.c.b16 %v380, %v377
        %v408 = vpack.c.b16 %v381, %v378
        %v409 = vpack.c.b16 %v382, %v379
        %v410 = vpack.c.b16 %v386, %v383
        %v411 = vpack.c.b16 %v387, %v384
        %v412 = vpack.c.b16 %v388, %v385
        %437 = vmatprep.subr.bf16.mxu0 %v390
        %438 = vmatpush1.bf16.msra.mxu0 %v389
        %439 = vmatprep.subr.bf16.mxu0 %v393
        %440 = vmatpush1.bf16.msra.mxu0 %v392
        %441 = vmatprep.subr.bf16.mxu0 %v396
        %442 = vmatpush1.bf16.msra.mxu0 %v395
        %443 = vmatprep.subr.bf16.mxu0 %v399
        %444 = vmatpush1.bf16.msra.mxu0 %v398
        %445 = vmatprep.subr.bf16.mxu0 %v402
        %446 = vmatpush1.bf16.msra.mxu0 %v401
        %447 = vmatprep.subr.bf16.mxu0 %v405
        %448 = vmatpush1.bf16.msra.mxu0 %v404
        %449 = vmatprep.subr.bf16.mxu0 %v408
        %450 = vmatpush1.bf16.msra.mxu0 %v407
        %451 = vmatprep.subr.bf16.mxu0 %v411
        %452 = vmatpush1.bf16.msra.mxu0 %v410
        %453 = vmatprep.subr.bf16.mxu0 0
        %454 = vmatpush1.bf16.msra.mxu0 0
        %455 = vmatprep.subr.bf16.mxu0 0
        %456 = vmatpush1.bf16.msra.mxu0 0
        %457 = vmatprep.subr.bf16.mxu0 0
        %458 = vmatpush1.bf16.msra.mxu0 0
        %459 = vmatprep.subr.bf16.mxu0 0
        %460 = vmatpush1.bf16.msra.mxu0 0
        %461 = vmatprep.subr.bf16.mxu0 0
        %462 = vmatpush1.bf16.msra.mxu0 0
        %463 = vmatprep.subr.bf16.mxu0 0
        %464 = vmatpush1.bf16.msra.mxu0 0
        %465 = vmatprep.subr.bf16.mxu0 0
        %466 = vmatpush1.bf16.msra.mxu0 0
        %467 = vmatprep.subr.bf16.mxu0 0
        %468 = vmatpush1.bf16.msra.mxu0 0
        %469 = vmatprep.mubr.bf16.mxu0 0
        %470 = vmatmul.mubr.bf16.gmra.mrb[0].mxu0 %v276
        %v471 = vpop.f32.mrb[0].mxu0
        %v472 = vadd.f32 0.0, %v471
        %v473 = vpop.f32.mrb[0].mxu0
        %v474 = vadd.f32 0.0, %v473
        %v475 = vpop.f32.mrb[0].mxu0
        %v476 = vpop.f32.mrb[0].mxu0
        %477 = vdwg.mxu0
        %478 = vmatprep.subr.bf16.mxu0 0
        %479 = vmatpush1.bf16.msra.mxu0 %v391
        %480 = vmatprep.subr.bf16.mxu0 0
        %481 = vmatpush1.bf16.msra.mxu0 %v394
        %482 = vmatprep.subr.bf16.mxu0 0
        %483 = vmatpush1.bf16.msra.mxu0 %v397
        %484 = vmatprep.subr.bf16.mxu0 0
        %485 = vmatpush1.bf16.msra.mxu0 %v400
        %486 = vmatprep.subr.bf16.mxu0 0
        %487 = vmatpush1.bf16.msra.mxu0 %v403
        %488 = vmatprep.subr.bf16.mxu0 0
        %489 = vmatpush1.bf16.msra.mxu0 %v406
        %490 = vmatprep.subr.bf16.mxu0 0
        %491 = vmatpush1.bf16.msra.mxu0 %v409
        %492 = vmatprep.subr.bf16.mxu0 0
        %493 = vmatpush1.bf16.msra.mxu0 %v412
        %494 = vmatprep.subr.bf16.mxu0 0
        %495 = vmatpush1.bf16.msra.mxu0 0
        %496 = vmatprep.subr.bf16.mxu0 0
        %497 = vmatpush1.bf16.msra.mxu0 0
        %498 = vmatprep.subr.bf16.mxu0 0
        %499 = vmatpush1.bf16.msra.mxu0 0
        %500 = vmatprep.subr.bf16.mxu0 0
        %501 = vmatpush1.bf16.msra.mxu0 0
        %502 = vmatprep.subr.bf16.mxu0 0
        %503 = vmatpush1.bf16.msra.mxu0 0
        %504 = vmatprep.subr.bf16.mxu0 0
        %505 = vmatpush1.bf16.msra.mxu0 0
        %506 = vmatprep.subr.bf16.mxu0 0
        %507 = vmatpush1.bf16.msra.mxu0 0
        %508 = vmatprep.subr.bf16.mxu0 0
        %509 = vmatpush1.bf16.msra.mxu0 0
        %510 = vmatprep.mubr.bf16.mxu0 0
        %511 = vmatmul.mubr.bf16.gmra.mrb[0].mxu0 %v276
        %v512 = vpop.f32.mrb[0].mxu0
        %v513 = vadd.f32 0.0, %v512
        %v514 = vpop.f32.mrb[0].mxu0
        %v515 = vpop.f32.mrb[0].mxu0
        %v516 = vpop.f32.mrb[0].mxu0
        %517 = vdwg.mxu0
        %v518 = vpack.c.bf16 %v472, %v472
        %v519 = vpack.c.bf16 %v474, %v474
        %v520 = vpack.c.bf16 %v513, %v513
        %v524 = vunpack.c.l.b16 %v518
        %v525 = vunpack.c.l.b16 %v519
        %v526 = vunpack.c.l.b16 %v520
        %v527 = vpack.c.b16 %v525, %v524
        %v528 = vpack.c.b16 %v526, %v526
        %531 = vst [vmem:[%s245] sm:$0xff] %v527
        %532 = vst [vmem:[%s245 + $0x8] sm:$0xf] %v528
        %s533 = sand.u32 %s135, 1
        %s534 = scalar_lea.sflag [#allocation4], %s533
        %s535 = sand.u32 %s135, 1
        %s536 = smul.addr %s535, 12
        %s537 = scalar_lea.vmem [#allocation7], %s536
        // Predicated region
        $region45: #{tpu_custom_call.1} parent=35 // pred_check
          %p538 = pneg %p145
        $region46: #{tpu_custom_call.1} parent=35 // pred_check_branch
          %540 = sbr.rel (%p538) target = $region48
        $region47: #{tpu_custom_call.1} parent=35 // pred_region
          %s542 = ssub.s32 192, 192
          %543 = vsyncadd %s534, %s542
          %s544 = smul.addr %s27, 3
          %s545 = smul.addr %s26, 6
          %s546 = sadd.s32 %s544, %s545
          %s547 = smul.addr %s546, 64
          %s548 = scalar_lea.hbm %s4, %s547
          %s550 = sshll.u32 %s537, 4
          %s551 = int_to_ptr.vmem [resolvable:$true] %s550
          %553 = dma.vmem_to_hbm [thread:$0]  %s551, 192, %s548, %s534
        $region48: #{tpu_custom_call.1} parent=35 // pred_fallthru
          _
      $region36: #{tpu_custom_call.1} parent=5 // pred_fallthru
        _
      %p554 = scmp.le.s32.totalorder 2, %s17
      // Predicated region
      $region49: #{tpu_custom_call.1} parent=5 // pred_check
        %p555 = pneg %p554
      $region50: #{tpu_custom_call.1} parent=5 // pred_check_branch
        %557 = sbr.rel (%p555) target = $region52
      $region51: #{tpu_custom_call.1} parent=5 // pred_region
        %s558 = ssub.s32 %s17, 2
        // Predicated region
        $region53: #{tpu_custom_call.1} parent=51 // pred_check
          %p559 = pneg %p151
        $region54: #{tpu_custom_call.1} parent=51 // pred_check_branch
          %561 = sbr.rel (%p559) target = $region56
        $region55: #{tpu_custom_call.1} parent=51 // pred_region
          %s562 = sand.u32 %s136, 1
          %s563 = scalar_lea.sflag [#allocation4], %s562
          %s564 = sand.u32 %s136, 1
          %s565 = smul.addr %s564, 12
          %s566 = scalar_lea.vmem [#allocation7], %s565
          %567 = dma.done %s563, 192
        $region56: #{tpu_custom_call.1} parent=51 // pred_fallthru
          _
      $region52: #{tpu_custom_call.1} parent=5 // pred_fallthru
        _
    $region6: #{tpu_custom_call.1} parent=1 // loop_footer
      %s21 = sadd.s32 1, %s17
    $region7: #{tpu_custom_call.1} parent=1 // loop_footer_branch
      %16 = sbr.rel target = $region3
    $region8: #{tpu_custom_call.1} parent=1 // loop_exit
      _
    %568 = vsyncpa [#allocation3], 1
    %s569 = scalar_lea.sflag [#allocation3], 1
    %570 = vsyncpa %s569, 1
    %571 = vsyncpa [#allocation6], 1
    %572 = vsyncpa [#allocation4], 1
    %s573 = scalar_lea.sflag [#allocation4], 1
    %574 = vsyncpa %s573, 1

</llo_original>
